<compile_context>
chip_gen: v5e
topology: v5e:2x2
jax: 0.10.0
libtpu: 0.0.40
codegen_flags: <defaults>
</compile_context>

<pallas_src>
import jax
import jax.numpy as jnp
from jax.experimental import pallas as pl
from jax.experimental.pallas import tpu as pltpu


def _round_up(x, m):
    return (x + m - 1) // m * m


def dueling_dqn_kernel(x_ref, w1_ref, w2_ref, wh1_ref, wh2_ref, bias_ref, q_ref):
    """One batch tile of the full Dueling-DQN forward pass.

    x_ref   : (bm, D_in)   f32   (cast to bf16 in-kernel)
    w1_ref  : (D_in, 256)  bf16  trunk layer 1
    w2_ref  : (256, 128)   bf16  trunk layer 2
    wh1_ref : (128, 128)   bf16  fused head layer 1  = [Wv1 | Wa1]
    wh2_ref : (128, n2)    bf16  fully-folded head layer 2: column j already
                                 computes V + (A_j - mean_k A_k)
    bias_ref: (4, bias_w)  f32   packed biases (row r = bias of fused layer r)
    q_ref   : (bm, n2)     f32   lane-dense padded Q output (valid lanes [0, A))
    """
    n_trunk1 = w1_ref.shape[1]   # 256
    n_trunk2 = w2_ref.shape[1]   # 128
    n_head1 = wh1_ref.shape[1]   # 128
    n2 = wh2_ref.shape[1]        # multiple of 128

    # In-kernel bf16 cast (cheap VPU filler); MXU accumulates in f32.
    x = x_ref[...].astype(jnp.bfloat16)

    # trunk: Linear(D_in,256)+ReLU, Linear(256,128)+ReLU
    h1 = jnp.dot(x, w1_ref[...], preferred_element_type=jnp.float32)
    h1 = jnp.maximum(h1 + bias_ref[0:1, :n_trunk1], 0.0).astype(jnp.bfloat16)

    h2 = jnp.dot(h1, w2_ref[...], preferred_element_type=jnp.float32)
    h2 = jnp.maximum(h2 + bias_ref[1:2, :n_trunk2], 0.0).astype(jnp.bfloat16)

    # fused head layer 1: both Linear(128,64)+ReLU streams as one lane-dense matmul
    h3 = jnp.dot(h2, wh1_ref[...], preferred_element_type=jnp.float32)
    h3 = jnp.maximum(h3 + bias_ref[2:3, :n_head1], 0.0).astype(jnp.bfloat16)

    # fully-folded head layer 2: the matmul directly yields q = V + (A - mean A)
    # on lanes [0, A); padded lanes are exactly 0 (zero weight columns, zero bias).
    out = jnp.dot(h3, wh2_ref[...], preferred_element_type=jnp.float32)
    q_ref[...] = out + bias_ref[3:4, :n2]


def pack_params(params, num_actions):
    """Fuse heads, fold the dueling combine into wh2, and pack biases.

    Call ONCE and reuse every inference step so weight prep stays off the
    per-step path.
    """
    (w1, b1, w2, b2, wv1, bv1, wv2, bv2, wa1, ba1, wa2, ba2) = params
    A = num_actions
    nv = wv1.shape[1]                         # 64 (value-head hidden)
    h = nv + wa1.shape[1]                     # 128: fused head-1 width
    n2 = _round_up(max(A, 1), 128)            # lane-dense head-2 / output width

    # head layer 1: [Wv1 | Wa1]
    wh1 = jnp.concatenate([wv1, wa1], axis=1)            # (128, 128)
    bh1 = jnp.concatenate([bv1, ba1], axis=1)            # (1, 128)

    # fully-folded head layer 2:
    #   column j (< A) = [ wv2 ; wa2[:, j] - mean_k wa2[:, k] ]
    #   bias_j         =   bv2 + ba2[j] - mean_k ba2[k]
    # so out[:, j] = V + (A_j - mean_k A_k) straight out of the matmul.
    wa2c = wa2 - jnp.mean(wa2, axis=1, keepdims=True)     # (64, A)
    wh2 = jnp.zeros((h, n2), jnp.float32)
    wh2 = wh2.at[:nv, :A].set(jnp.broadcast_to(wv2, (nv, A)))   # value into every column
    wh2 = wh2.at[nv:, :A].set(wa2c)                             # centered advantage
    bh2 = jnp.zeros((1, n2), jnp.float32)
    bh2 = bh2.at[:, :A].set(bv2[0, 0] + ba2[0] - jnp.mean(ba2))

    # pack the 4 bias rows into one lane-padded f32 slab (single small DMA)
    bias_w = max(w1.shape[1], w2.shape[1], h, n2)
    bias = jnp.zeros((4, bias_w), jnp.float32)
    bias = bias.at[0, :w1.shape[1]].set(b1[0])
    bias = bias.at[1, :w2.shape[1]].set(b2[0])
    bias = bias.at[2, :h].set(bh1[0])
    bias = bias.at[3, :n2].set(bh2[0])

    bf = jnp.bfloat16
    return (w1.astype(bf), w2.astype(bf), wh1.astype(bf), wh2.astype(bf), bias)


def dueling_dqn_forward(x_nchw, packed_params, num_actions, *, block_b=512):
    """x_nchw: (B, depth, height, width) float32. Returns (B, num_actions) float32."""
    w1, w2, wh1, wh2, bias = packed_params
    B = x_nchw.shape[0]
    d_in = w1.shape[0]
    n2 = wh2.shape[1]
    A = num_actions

    # nn.Flatten(); keep f32 — the bf16 cast happens inside the kernel.
    x_flat = x_nchw.reshape(B, -1)
    assert x_flat.shape[1] == d_in

    # batch tile: multiple of 16 (bf16 sublane pair); for B >= 32 cap it so the
    # grid has >= 2 steps (uses both v7x TensorCores under "parallel").
    bm = min(_round_up(block_b, 16), _round_up(B, 16))
    if B >= 32:
        bm = min(bm, _round_up(pl.cdiv(B, 2), 16))
    b_pad = _round_up(B, bm)
    if b_pad != B:
        x_flat = jnp.pad(x_flat, ((0, b_pad - B), (0, 0)))
    n_blocks = b_pad // bm

    q_pad = pl.pallas_call(
        dueling_dqn_kernel,
        out_shape=jax.ShapeDtypeStruct((b_pad, n2), jnp.float32),
        grid=(n_blocks,),
        in_specs=[
            pl.BlockSpec((bm, d_in), lambda i: (i, 0)),      # x: tiled over batch
            pl.BlockSpec(w1.shape, lambda i: (0, 0)),        # weights: resident blocks
            pl.BlockSpec(w2.shape, lambda i: (0, 0)),
            pl.BlockSpec(wh1.shape, lambda i: (0, 0)),
            pl.BlockSpec(wh2.shape, lambda i: (0, 0)),
            pl.BlockSpec(bias.shape, lambda i: (0, 0)),
        ],
        out_specs=pl.BlockSpec((bm, n2), lambda i: (i, 0)),  # lane-dense output slab
        compiler_params=pltpu.CompilerParams(
            dimension_semantics=("parallel",),               # megacore on v7x, pipelining elsewhere
        ),
    )(x_flat, w1, w2, wh1, wh2, bias)

    return q_pad[:B, :A]


def init_params(key, input_size, num_actions):
    """Deterministic synthetic parameters (PyTorch-style init, pre-transposed)."""
    ks = jax.random.split(key, 12)

    def lin(kw, kb, fan_in, fan_out):
        scale = 1.0 / jnp.sqrt(jnp.float32(fan_in))
        w = jax.random.uniform(kw, (fan_in, fan_out), jnp.float32, -scale, scale)
        b = jax.random.uniform(kb, (1, fan_out), jnp.float32, -scale, scale)
        return w, b

    w1, b1 = lin(ks[0], ks[1], input_size, 256)
    w2, b2 = lin(ks[2], ks[3], 256, 128)
    wv1, bv1 = lin(ks[4], ks[5], 128, 64)
    wv2, bv2 = lin(ks[6], ks[7], 64, 1)
    wa1, ba1 = lin(ks[8], ks[9], 128, 64)
    wa2, ba2 = lin(ks[10], ks[11], 64, num_actions)
    return (w1, b1, w2, b2, wv1, bv1, wv2, bv2, wa1, ba1, wa2, ba2)


def reference_forward(x_nchw, params):
    """Pure-JAX reference matching the PyTorch module semantics (same bf16
    weight/activation casts as the kernel, f32 accumulation, unfused dueling)."""
    (w1, b1, w2, b2, wv1, bv1, wv2, bv2, wa1, ba1, wa2, ba2) = params
    bf = jnp.bfloat16

    def mm(a, w):
        return jnp.dot(a.astype(bf), w.astype(bf), preferred_element_type=jnp.float32)

    x = x_nchw.reshape(x_nchw.shape[0], -1)
    h = jnp.maximum(mm(x, w1) + b1, 0.0)
    h = jnp.maximum(mm(h, w2) + b2, 0.0)
    v = mm(jnp.maximum(mm(h, wv1) + bv1, 0.0), wv2) + bv2
    a = mm(jnp.maximum(mm(h, wa1) + ba1, 0.0), wa2) + ba2
    return v + (a - a.mean(axis=1, keepdims=True))


if __name__ == "__main__":
    # Board dimensions: height=4, width=8, depth=4
    #   input_size  = 4*8*4 = 128
    #   num_actions = depth*width = 32
    height, width, depth = 4, 8, 4
    input_size = height * width * depth
    num_actions = depth * width
    batch = 2

    key = jax.random.PRNGKey(0)
    k_x, k_p = jax.random.split(key)
    x = jax.random.normal(k_x, (batch, depth, height, width), jnp.float32)
    params = init_params(k_p, input_size, num_actions)

    packed = pack_params(params, num_actions)          # do once; reuse every step
    q = dueling_dqn_forward(x, packed, num_actions)
    q = jax.block_until_ready(q)

    q_ref = reference_forward(x, params)
    assert q.shape == (batch, num_actions)
    err = float(jnp.max(jnp.abs(q - q_ref)))
    assert jnp.allclose(q, q_ref, atol=5e-3, rtol=5e-3), err

    print("KERNEL_OK")
</pallas_src>

<mosaic_0001>
module attributes {stable_mosaic.version = 11 : i64} {
  func.func @dueling_dqn_kernel(%arg0: i32, %arg1: memref<16x128xf32, #tpu.memory_space<vmem>>, %arg2: memref<128x256xbf16, #tpu.memory_space<vmem>>, %arg3: memref<256x128xbf16, #tpu.memory_space<vmem>>, %arg4: memref<128x128xbf16, #tpu.memory_space<vmem>>, %arg5: memref<128x128xbf16, #tpu.memory_space<vmem>>, %arg6: memref<4x256xf32, #tpu.memory_space<vmem>>, %arg7: memref<16x128xf32, #tpu.memory_space<vmem>>) attributes {dimension_semantics = [#tpu.dimension_semantics<parallel>], iteration_bounds = array<i64: 1>, scalar_prefetch = 0 : i64, scratch_operands = 0 : i64, tpu.core_type = #tpu.core_type<tc>, window_params = [{transform_indices = @transform_0, window_bounds = array<i64: 16, 128>}, {pipeline_mode = #tpu.pipeline_mode<synchronous>, transform_indices = @transform_1, window_bounds = array<i64: 128, 256>}, {pipeline_mode = #tpu.pipeline_mode<synchronous>, transform_indices = @transform_2, window_bounds = array<i64: 256, 128>}, {pipeline_mode = #tpu.pipeline_mode<synchronous>, transform_indices = @transform_3, window_bounds = array<i64: 128, 128>}, {pipeline_mode = #tpu.pipeline_mode<synchronous>, transform_indices = @transform_4, window_bounds = array<i64: 128, 128>}, {pipeline_mode = #tpu.pipeline_mode<synchronous>, transform_indices = @transform_5, window_bounds = array<i64: 4, 256>}, {transform_indices = @transform_6, window_bounds = array<i64: 16, 128>}]} {
    %c0 = arith.constant 0 : index
    %c0_0 = arith.constant 0 : index
    %0 = vector.load %arg1[%c0, %c0_0] : memref<16x128xf32, #tpu.memory_space<vmem>>, vector<16x128xf32>
    %1 = arith.truncf %0 : vector<16x128xf32> to vector<16x128xbf16>
    %c0_1 = arith.constant 0 : index
    %c0_2 = arith.constant 0 : index
    %2 = vector.load %arg2[%c0_1, %c0_2] : memref<128x256xbf16, #tpu.memory_space<vmem>>, vector<128x256xbf16>
    %cst = arith.constant dense<0.000000e+00> : vector<16x256xf32>
    %3 = tpu.matmul %1, %2, %cst {dimension_numbers = #tpu.dot_dimension_numbers<[1], [0], [0], [1], [0, 0, 1, 1], [], []>} : vector<16x128xbf16>, vector<128x256xbf16>, vector<16x256xf32> -> vector<16x256xf32>
    %c0_3 = arith.constant 0 : index
    %c0_4 = arith.constant 0 : index
    %4 = vector.load %arg6[%c0_3, %c0_4] : memref<4x256xf32, #tpu.memory_space<vmem>>, vector<1x256xf32>
    %5 = vector.broadcast %4 : vector<1x256xf32> to vector<16x256xf32>
    %6 = arith.addf %3, %5 : vector<16x256xf32>
    %cst_5 = arith.constant 0.000000e+00 : f32
    %7 = vector.broadcast %cst_5 : f32 to vector<16x256xf32>
    %8 = arith.maximumf %6, %7 : vector<16x256xf32>
    %9 = arith.truncf %8 : vector<16x256xf32> to vector<16x256xbf16>
    %c0_6 = arith.constant 0 : index
    %c0_7 = arith.constant 0 : index
    %10 = vector.load %arg3[%c0_6, %c0_7] : memref<256x128xbf16, #tpu.memory_space<vmem>>, vector<256x128xbf16>
    %cst_8 = arith.constant dense<0.000000e+00> : vector<16x128xf32>
    %11 = tpu.matmul %9, %10, %cst_8 {dimension_numbers = #tpu.dot_dimension_numbers<[1], [0], [0], [1], [0, 0, 1, 1], [], []>} : vector<16x256xbf16>, vector<256x128xbf16>, vector<16x128xf32> -> vector<16x128xf32>
    %c1 = arith.constant 1 : index
    %c0_9 = arith.constant 0 : index
    %12 = vector.load %arg6[%c1, %c0_9] : memref<4x256xf32, #tpu.memory_space<vmem>>, vector<1x128xf32>
    %13 = vector.broadcast %12 : vector<1x128xf32> to vector<16x128xf32>
    %14 = arith.addf %11, %13 : vector<16x128xf32>
    %cst_10 = arith.constant 0.000000e+00 : f32
    %15 = vector.broadcast %cst_10 : f32 to vector<16x128xf32>
    %16 = arith.maximumf %14, %15 : vector<16x128xf32>
    %17 = arith.truncf %16 : vector<16x128xf32> to vector<16x128xbf16>
    %c0_11 = arith.constant 0 : index
    %c0_12 = arith.constant 0 : index
    %18 = vector.load %arg4[%c0_11, %c0_12] : memref<128x128xbf16, #tpu.memory_space<vmem>>, vector<128x128xbf16>
    %cst_13 = arith.constant dense<0.000000e+00> : vector<16x128xf32>
    %19 = tpu.matmul %17, %18, %cst_13 {dimension_numbers = #tpu.dot_dimension_numbers<[1], [0], [0], [1], [0, 0, 1, 1], [], []>} : vector<16x128xbf16>, vector<128x128xbf16>, vector<16x128xf32> -> vector<16x128xf32>
    %c2 = arith.constant 2 : index
    %c0_14 = arith.constant 0 : index
    %20 = vector.load %arg6[%c2, %c0_14] : memref<4x256xf32, #tpu.memory_space<vmem>>, vector<1x128xf32>
    %21 = vector.broadcast %20 : vector<1x128xf32> to vector<16x128xf32>
    %22 = arith.addf %19, %21 : vector<16x128xf32>
    %cst_15 = arith.constant 0.000000e+00 : f32
    %23 = vector.broadcast %cst_15 : f32 to vector<16x128xf32>
    %24 = arith.maximumf %22, %23 : vector<16x128xf32>
    %25 = arith.truncf %24 : vector<16x128xf32> to vector<16x128xbf16>
    %c0_16 = arith.constant 0 : index
    %c0_17 = arith.constant 0 : index
    %26 = vector.load %arg5[%c0_16, %c0_17] : memref<128x128xbf16, #tpu.memory_space<vmem>>, vector<128x128xbf16>
    %cst_18 = arith.constant dense<0.000000e+00> : vector<16x128xf32>
    %27 = tpu.matmul %25, %26, %cst_18 {dimension_numbers = #tpu.dot_dimension_numbers<[1], [0], [0], [1], [0, 0, 1, 1], [], []>} : vector<16x128xbf16>, vector<128x128xbf16>, vector<16x128xf32> -> vector<16x128xf32>
    %c3 = arith.constant 3 : index
    %c0_19 = arith.constant 0 : index
    %28 = vector.load %arg6[%c3, %c0_19] : memref<4x256xf32, #tpu.memory_space<vmem>>, vector<1x128xf32>
    %29 = vector.broadcast %28 : vector<1x128xf32> to vector<16x128xf32>
    %30 = arith.addf %27, %29 : vector<16x128xf32>
    %c0_20 = arith.constant 0 : index
    %c0_21 = arith.constant 0 : index
    %31 = vector.load %arg7[%c0_20, %c0_21] : memref<16x128xf32, #tpu.memory_space<vmem>>, vector<16x128xf32>
    tpu.vector_store %arg7[%c0_20, %c0_21], %30 {strides = array<i32>} : memref<16x128xf32, #tpu.memory_space<vmem>>, vector<16x128xf32>,
    return
  }
  func.func @transform_0(%arg0: i32) -> (i32, i32) {
    %c0_i32 = arith.constant 0 : i32
    %c0_i32_0 = arith.constant 0 : i32
    return %arg0, %c0_i32 : i32, i32
  }
  func.func @transform_1(%arg0: i32) -> (i32, i32) {
    %c0_i32 = arith.constant 0 : i32
    %c0_i32_0 = arith.constant 0 : i32
    %c0_i32_1 = arith.constant 0 : i32
    return %c0_i32, %c0_i32_0 : i32, i32
  }
  func.func @transform_2(%arg0: i32) -> (i32, i32) {
    %c0_i32 = arith.constant 0 : i32
    %c0_i32_0 = arith.constant 0 : i32
    %c0_i32_1 = arith.constant 0 : i32
    return %c0_i32, %c0_i32_0 : i32, i32
  }
  func.func @transform_3(%arg0: i32) -> (i32, i32) {
    %c0_i32 = arith.constant 0 : i32
    %c0_i32_0 = arith.constant 0 : i32
    %c0_i32_1 = arith.constant 0 : i32
    return %c0_i32, %c0_i32_0 : i32, i32
  }
  func.func @transform_4(%arg0: i32) -> (i32, i32) {
    %c0_i32 = arith.constant 0 : i32
    %c0_i32_0 = arith.constant 0 : i32
    %c0_i32_1 = arith.constant 0 : i32
    return %c0_i32, %c0_i32_0 : i32, i32
  }
  func.func @transform_5(%arg0: i32) -> (i32, i32) {
    %c0_i32 = arith.constant 0 : i32
    %c0_i32_0 = arith.constant 0 : i32
    %c0_i32_1 = arith.constant 0 : i32
    return %c0_i32, %c0_i32_0 : i32, i32
  }
  func.func @transform_6(%arg0: i32) -> (i32, i32) {
    %c0_i32 = arith.constant 0 : i32
    %c0_i32_0 = arith.constant 0 : i32
    return %arg0, %c0_i32 : i32, i32
  }
}

</mosaic_0001>

<llo_original>
// kernel: tpu_custom_call.1
$region0: #{tpu_custom_call.1}
  #allocation0 [shape = 'u32[]', space=smem, size = 0x4, offset = 0x4, fixed_abs, tag = 'smem constant byte address 0x4 - core index']
  #allocation1 [shape = 'u32[72,128]{1,0:T(1,128)}', space=vmem, size = 0x9000, scoped, tag = 'internal scratch']
  %s0 = inlined_call_operand.hbm [shape: f32[16,128], index: 0, kind: input, shape index: {}]
  %s1 = inlined_call_operand.hbm [shape: bf16[128,256], index: 1, kind: input, shape index: {}]
  %s2 = inlined_call_operand.hbm [shape: bf16[256,128], index: 2, kind: input, shape index: {}]
  %s3 = inlined_call_operand.hbm [shape: bf16[128,128], index: 3, kind: input, shape index: {}]
  %s4 = inlined_call_operand.hbm [shape: bf16[128,128], index: 4, kind: input, shape index: {}]
  %s5 = inlined_call_operand.hbm [shape: f32[4,256], index: 5, kind: input, shape index: {}]
  %s6 = inlined_call_operand.hbm [shape: f32[16,128], index: 6, kind: output, shape index: {}]
  %s7 = sld [smem:[#allocation0]]
  $region58: #{tpu_custom_call.1} parent=0
    _
  %s9 = ssub.s32 1, %s7
  %s10 = scalar_select 0, %s9, %s7
  $region1: #{tpu_custom_call.1} parent=0
    #allocation2 [shape = 'u8[8192]{0}', space=vmem, size = 0x2000, scoped, tag = 'input window, operand 0, single buffered']
    #allocation3 [shape = 's32[1]{0}', space=sflag, size = 0x4, scoped, tag = 'scoped memory for tpu_custom_call.1']
    #allocation4 [shape = 's32[1]{0}', space=sflag, size = 0x4, scoped, tag = 'scoped memory for tpu_custom_call.1']
    #allocation5 [shape = 'u8[65536]{0}', space=vmem, size = 0x10000, scoped, tag = 'input window, operand 1, single buffered']
    #allocation6 [shape = 's32[1]{0}', space=sflag, size = 0x4, scoped, tag = 'scoped memory for tpu_custom_call.1']
    #allocation7 [shape = 'u8[65536]{0}', space=vmem, size = 0x10000, scoped, tag = 'input window, operand 2, single buffered']
    #allocation8 [shape = 'u8[32768]{0}', space=vmem, size = 0x8000, scoped, tag = 'input window, operand 3, single buffered']
    #allocation9 [shape = 's32[1]{0}', space=sflag, size = 0x4, scoped, tag = 'scoped memory for tpu_custom_call.1']
    #allocation10 [shape = 'u8[32768]{0}', space=vmem, size = 0x8000, scoped, tag = 'input window, operand 4, single buffered']
    #allocation11 [shape = 'u8[4096]{0}', space=vmem, size = 0x1000, scoped, tag = 'input window, operand 5, single buffered']
    #allocation12 [shape = 's32[1]{0}', space=sflag, size = 0x4, scoped, tag = 'scoped memory for tpu_custom_call.1']
    #allocation13 [shape = 'u8[8192]{0}', space=vmem, size = 0x2000, scoped, tag = 'output window, operand 0, single buffered']
    %11 = vsyncpa [#allocation3], 0
    %12 = vsyncpa [#allocation6], 0
    %13 = vsyncpa [#allocation9], 0
    %14 = vsyncpa [#allocation12], 0
    %15 = vsyncpa [#allocation4], 0
    // Predicated region
    $region2: #{tpu_custom_call.1} parent=1 // pred_check
      _
    $region3: #{tpu_custom_call.1} parent=1 // pred_check_branch
      %17 = sbr.rel (0) target = $region5
    $region4: #{tpu_custom_call.1} parent=1 // pred_region
      %19 = vsyncadd [#allocation3], 0
      %s20 = sshll.u32 %s0, 4
      %s21 = int_to_ptr.hbm [resolvable:$true] %s20
      %s22 = sshll.u32 [#allocation2], 4
      %s23 = int_to_ptr.vmem [resolvable:$true] %s22
      %28 = dma.hbm_to_vmem [thread:$0]  %s21, 256, %s23, [#allocation3], 128, 128, 8
    $region5: #{tpu_custom_call.1} parent=1 // pred_fallthru
      _
    // Predicated region
    $region6: #{tpu_custom_call.1} parent=1 // pred_check
      _
    $region7: #{tpu_custom_call.1} parent=1 // pred_check_branch
      %30 = sbr.rel (0) target = $region9
    $region8: #{tpu_custom_call.1} parent=1 // pred_region
      %32 = vsyncadd [#allocation6], 0
      %s33 = sshll.u32 %s1, 4
      %s34 = int_to_ptr.hbm [resolvable:$true] %s33
      %s35 = sshll.u32 [#allocation5], 4
      %s36 = int_to_ptr.vmem [resolvable:$true] %s35
      %41 = dma.hbm_to_vmem [thread:$0]  %s34, 2048, %s36, [#allocation6], 128, 128, 8
    $region9: #{tpu_custom_call.1} parent=1 // pred_fallthru
      _
    // Predicated region
    $region10: #{tpu_custom_call.1} parent=1 // pred_check
      _
    $region11: #{tpu_custom_call.1} parent=1 // pred_check_branch
      %43 = sbr.rel (0) target = $region13
    $region12: #{tpu_custom_call.1} parent=1 // pred_region
      %45 = vsyncadd [#allocation6], 0
      %s46 = sshll.u32 %s2, 4
      %s47 = int_to_ptr.hbm [resolvable:$true] %s46
      %s48 = sshll.u32 [#allocation7], 4
      %s49 = int_to_ptr.vmem [resolvable:$true] %s48
      %54 = dma.hbm_to_vmem [thread:$0]  %s47, 2048, %s49, [#allocation6], 64, 64, 4
    $region13: #{tpu_custom_call.1} parent=1 // pred_fallthru
      _
    // Predicated region
    $region14: #{tpu_custom_call.1} parent=1 // pred_check
      _
    $region15: #{tpu_custom_call.1} parent=1 // pred_check_branch
      %56 = sbr.rel (0) target = $region17
    $region16: #{tpu_custom_call.1} parent=1 // pred_region
      %58 = vsyncadd [#allocation9], 0
      %s59 = sshll.u32 %s3, 4
      %s60 = int_to_ptr.hbm [resolvable:$true] %s59
      %s61 = sshll.u32 [#allocation8], 4
      %s62 = int_to_ptr.vmem [resolvable:$true] %s61
      %67 = dma.hbm_to_vmem [thread:$0]  %s60, 1024, %s62, [#allocation9], 64, 64, 4
    $region17: #{tpu_custom_call.1} parent=1 // pred_fallthru
      _
    // Predicated region
    $region18: #{tpu_custom_call.1} parent=1 // pred_check
      _
    $region19: #{tpu_custom_call.1} parent=1 // pred_check_branch
      %69 = sbr.rel (0) target = $region21
    $region20: #{tpu_custom_call.1} parent=1 // pred_region
      %71 = vsyncadd [#allocation9], 0
      %s72 = sshll.u32 %s4, 4
      %s73 = int_to_ptr.hbm [resolvable:$true] %s72
      %s74 = sshll.u32 [#allocation10], 4
      %s75 = int_to_ptr.vmem [resolvable:$true] %s74
      %80 = dma.hbm_to_vmem [thread:$0]  %s73, 1024, %s75, [#allocation9], 64, 64, 4
    $region21: #{tpu_custom_call.1} parent=1 // pred_fallthru
      _
    // Predicated region
    $region22: #{tpu_custom_call.1} parent=1 // pred_check
      _
    $region23: #{tpu_custom_call.1} parent=1 // pred_check_branch
      %82 = sbr.rel (0) target = $region25
    $region24: #{tpu_custom_call.1} parent=1 // pred_region
      %84 = vsyncadd [#allocation12], 0
      %s86 = sshll.u32 %s5, 4
      %s87 = int_to_ptr.hbm [resolvable:$true] %s86
      %s88 = sshll.u32 [#allocation11], 4
      %s89 = int_to_ptr.vmem [resolvable:$true] %s88
      %91 = dma.hbm_to_vmem [thread:$0]  %s87, 128, %s89, [#allocation12]
    $region25: #{tpu_custom_call.1} parent=1 // pred_fallthru
      _
    // Predicated region
    $region26: #{tpu_custom_call.1} parent=1 // pred_check
      _
    $region27: #{tpu_custom_call.1} parent=1 // pred_check_branch
      %93 = sbr.rel (0) target = $region29
    $region28: #{tpu_custom_call.1} parent=1 // pred_region
      %95 = dma.done [#allocation3], 256
    $region29: #{tpu_custom_call.1} parent=1 // pred_fallthru
      _
    // Predicated region
    $region30: #{tpu_custom_call.1} parent=1 // pred_check
      _
    $region31: #{tpu_custom_call.1} parent=1 // pred_check_branch
      %97 = sbr.rel (0) target = $region33
    $region32: #{tpu_custom_call.1} parent=1 // pred_region
      %99 = dma.done [#allocation6], 2048
    $region33: #{tpu_custom_call.1} parent=1 // pred_fallthru
      _
    // Predicated region
    $region34: #{tpu_custom_call.1} parent=1 // pred_check
      _
    $region35: #{tpu_custom_call.1} parent=1 // pred_check_branch
      %101 = sbr.rel (0) target = $region37
    $region36: #{tpu_custom_call.1} parent=1 // pred_region
      %103 = dma.done [#allocation6], 2048
    $region37: #{tpu_custom_call.1} parent=1 // pred_fallthru
      _
    // Predicated region
    $region38: #{tpu_custom_call.1} parent=1 // pred_check
      _
    $region39: #{tpu_custom_call.1} parent=1 // pred_check_branch
      %105 = sbr.rel (0) target = $region41
    $region40: #{tpu_custom_call.1} parent=1 // pred_region
      %107 = dma.done [#allocation9], 1024
    $region41: #{tpu_custom_call.1} parent=1 // pred_fallthru
      _
    // Predicated region
    $region42: #{tpu_custom_call.1} parent=1 // pred_check
      _
    $region43: #{tpu_custom_call.1} parent=1 // pred_check_branch
      %109 = sbr.rel (0) target = $region45
    $region44: #{tpu_custom_call.1} parent=1 // pred_region
      %111 = dma.done [#allocation9], 1024
    $region45: #{tpu_custom_call.1} parent=1 // pred_fallthru
      _
    // Predicated region
    $region46: #{tpu_custom_call.1} parent=1 // pred_check
      _
    $region47: #{tpu_custom_call.1} parent=1 // pred_check_branch
      %113 = sbr.rel (0) target = $region49
    $region48: #{tpu_custom_call.1} parent=1 // pred_region
      %115 = dma.done [#allocation12], 128
    $region49: #{tpu_custom_call.1} parent=1 // pred_fallthru
      _
    %v116 = vld [vmem:[#allocation2] sm:$0xff]
    %v117 = vld [vmem:[#allocation2 + $0x8] sm:$0xff]
    %v118 = vpack.c.bf16 %v117, %v116
    %v119 = vld [vmem:[#allocation5] sm:$0xff]
    %v120 = vld [vmem:[#allocation5 + $0x8] sm:$0xff]
    %v121 = vld [vmem:[#allocation5 + $0x10] sm:$0xff]
    %v122 = vld [vmem:[#allocation5 + $0x18] sm:$0xff]
    %v123 = vld [vmem:[#allocation5 + $0x20] sm:$0xff]
    %v124 = vld [vmem:[#allocation5 + $0x28] sm:$0xff]
    %v125 = vld [vmem:[#allocation5 + $0x30] sm:$0xff]
    %v126 = vld [vmem:[#allocation5 + $0x38] sm:$0xff]
    %v127 = vld [vmem:[#allocation5 + $0x40] sm:$0xff]
    %v128 = vld [vmem:[#allocation5 + $0x48] sm:$0xff]
    %v129 = vld [vmem:[#allocation5 + $0x50] sm:$0xff]
    %v130 = vld [vmem:[#allocation5 + $0x58] sm:$0xff]
    %v131 = vld [vmem:[#allocation5 + $0x60] sm:$0xff]
    %v132 = vld [vmem:[#allocation5 + $0x68] sm:$0xff]
    %v133 = vld [vmem:[#allocation5 + $0x70] sm:$0xff]
    %v134 = vld [vmem:[#allocation5 + $0x78] sm:$0xff]
    %v135 = vld [vmem:[#allocation11] ss:$4 sm:$0x3]
    %v137 = vperm.slane %v135, 0
    %v138 = vperm.slane %v135, 1
    %v157 = vunpack.c.l.b16 %v119
    %v158 = vunpack.c.h.b16 %v119
    %v159 = vunpack.c.l.b16 %v120
    %v160 = vunpack.c.h.b16 %v120
    %v161 = vunpack.c.l.b16 %v121
    %v162 = vunpack.c.h.b16 %v121
    %v163 = vunpack.c.l.b16 %v122
    %v164 = vunpack.c.h.b16 %v122
    %v165 = vunpack.c.l.b16 %v123
    %v166 = vunpack.c.h.b16 %v123
    %v167 = vunpack.c.l.b16 %v124
    %v168 = vunpack.c.h.b16 %v124
    %v169 = vunpack.c.l.b16 %v125
    %v170 = vunpack.c.h.b16 %v125
    %v171 = vunpack.c.l.b16 %v126
    %v172 = vunpack.c.h.b16 %v126
    %v173 = vunpack.c.l.b16 %v127
    %v174 = vunpack.c.h.b16 %v127
    %v175 = vunpack.c.l.b16 %v128
    %v176 = vunpack.c.h.b16 %v128
    %v177 = vunpack.c.l.b16 %v129
    %v178 = vunpack.c.h.b16 %v129
    %v179 = vunpack.c.l.b16 %v130
    %v180 = vunpack.c.h.b16 %v130
    %v181 = vunpack.c.l.b16 %v131
    %v182 = vunpack.c.h.b16 %v131
    %v183 = vunpack.c.l.b16 %v132
    %v184 = vunpack.c.h.b16 %v132
    %v185 = vunpack.c.l.b16 %v133
    %v186 = vunpack.c.h.b16 %v133
    %v187 = vunpack.c.l.b16 %v134
    %v188 = vunpack.c.h.b16 %v134
    %v189 = vpack.c.b16 %v159, %v157
    %v190 = vpack.c.b16 %v160, %v158
    %v191 = vpack.c.b16 %v163, %v161
    %v192 = vpack.c.b16 %v164, %v162
    %v193 = vpack.c.b16 %v167, %v165
    %v194 = vpack.c.b16 %v168, %v166
    %v195 = vpack.c.b16 %v171, %v169
    %v196 = vpack.c.b16 %v172, %v170
    %v197 = vpack.c.b16 %v175, %v173
    %v198 = vpack.c.b16 %v176, %v174
    %v199 = vpack.c.b16 %v179, %v177
    %v200 = vpack.c.b16 %v180, %v178
    %v201 = vpack.c.b16 %v183, %v181
    %v202 = vpack.c.b16 %v184, %v182
    %v203 = vpack.c.b16 %v187, %v185
    %v204 = vpack.c.b16 %v188, %v186
    %221 = vmatpush.bf16.msra.mxu0 %v203
    %222 = vmatpush.bf16.msra.mxu0 %v201
    %223 = vmatpush.bf16.msra.mxu0 %v199
    %224 = vmatpush.bf16.msra.mxu0 %v197
    %225 = vmatpush.bf16.msra.mxu0 %v195
    %226 = vmatpush.bf16.msra.mxu0 %v193
    %227 = vmatpush.bf16.msra.mxu0 %v191
    %228 = vmatpush.bf16.msra.mxu0 %v189
    %229 = vmatmul.bf16.gmra.mxu0 %v118
    %v230 = vpop.f32.mrf.mxu0
    %v231 = vadd.f32 %v137, %v230
    %v232 = vpop.f32.mrf.mxu0
    %v233 = vadd.f32 %v137, %v232
    %234 = vdwg.mxu0
    %235 = vmatpush.bf16.msra.mxu0 %v204
    %236 = vmatpush.bf16.msra.mxu0 %v202
    %237 = vmatpush.bf16.msra.mxu0 %v200
    %238 = vmatpush.bf16.msra.mxu0 %v198
    %239 = vmatpush.bf16.msra.mxu0 %v196
    %240 = vmatpush.bf16.msra.mxu0 %v194
    %241 = vmatpush.bf16.msra.mxu0 %v192
    %242 = vmatpush.bf16.msra.mxu0 %v190
    %243 = vmatmul.bf16.gmra.mxu0 %v118
    %v244 = vpop.f32.mrf.mxu0
    %v245 = vadd.f32 %v138, %v244
    %v246 = vpop.f32.mrf.mxu0
    %v247 = vadd.f32 %v138, %v246
    %248 = vdwg.mxu0
    %v249 = vmax.f32 %v231, 0.0
    %v250 = vmax.f32 %v245, 0.0
    %v251 = vmax.f32 %v233, 0.0
    %v252 = vmax.f32 %v247, 0.0
    %v253 = vpack.c.bf16 %v251, %v249
    %v254 = vpack.c.bf16 %v252, %v250
    %v255 = vld [vmem:[#allocation7] sm:$0xf]
    %v256 = vld [vmem:[#allocation7 + $0x4] sm:$0xf]
    %v257 = vld [vmem:[#allocation7 + $0x8] sm:$0xf]
    %v258 = vld [vmem:[#allocation7 + $0xc] sm:$0xf]
    %v259 = vld [vmem:[#allocation7 + $0x10] sm:$0xf]
    %v260 = vld [vmem:[#allocation7 + $0x14] sm:$0xf]
    %v261 = vld [vmem:[#allocation7 + $0x18] sm:$0xf]
    %v262 = vld [vmem:[#allocation7 + $0x1c] sm:$0xf]
    %v263 = vld [vmem:[#allocation7 + $0x20] sm:$0xf]
    %v264 = vld [vmem:[#allocation7 + $0x24] sm:$0xf]
    %v265 = vld [vmem:[#allocation7 + $0x28] sm:$0xf]
    %v266 = vld [vmem:[#allocation7 + $0x2c] sm:$0xf]
    %v267 = vld [vmem:[#allocation7 + $0x30] sm:$0xf]
    %v268 = vld [vmem:[#allocation7 + $0x34] sm:$0xf]
    %v269 = vld [vmem:[#allocation7 + $0x38] sm:$0xf]
    %v270 = vld [vmem:[#allocation7 + $0x3c] sm:$0xf]
    %v271 = vld [vmem:[#allocation7 + $0x40] sm:$0xf]
    %v272 = vld [vmem:[#allocation7 + $0x44] sm:$0xf]
    %v273 = vld [vmem:[#allocation7 + $0x48] sm:$0xf]
    %v274 = vld [vmem:[#allocation7 + $0x4c] sm:$0xf]
    %v275 = vld [vmem:[#allocation7 + $0x50] sm:$0xf]
    %v276 = vld [vmem:[#allocation7 + $0x54] sm:$0xf]
    %v277 = vld [vmem:[#allocation7 + $0x58] sm:$0xf]
    %v278 = vld [vmem:[#allocation7 + $0x5c] sm:$0xf]
    %v279 = vld [vmem:[#allocation7 + $0x60] sm:$0xf]
    %v280 = vld [vmem:[#allocation7 + $0x64] sm:$0xf]
    %v281 = vld [vmem:[#allocation7 + $0x68] sm:$0xf]
    %v282 = vld [vmem:[#allocation7 + $0x6c] sm:$0xf]
    %v283 = vld [vmem:[#allocation7 + $0x70] sm:$0xf]
    %v284 = vld [vmem:[#allocation7 + $0x74] sm:$0xf]
    %v285 = vld [vmem:[#allocation7 + $0x78] sm:$0xf]
    %v286 = vld [vmem:[#allocation7 + $0x7c] sm:$0xf]
    %v287 = vld [vmem:[#allocation11 + $0x1] sm:$0x1]
    %v288 = vperm.slane %v287, 0
    %v321 = vunpack.c.l.b16 %v255
    %v322 = vunpack.c.l.b16 %v256
    %v323 = vunpack.c.l.b16 %v257
    %v324 = vunpack.c.l.b16 %v258
    %v325 = vunpack.c.l.b16 %v259
    %v326 = vunpack.c.l.b16 %v260
    %v327 = vunpack.c.l.b16 %v261
    %v328 = vunpack.c.l.b16 %v262
    %v329 = vunpack.c.l.b16 %v263
    %v330 = vunpack.c.l.b16 %v264
    %v331 = vunpack.c.l.b16 %v265
    %v332 = vunpack.c.l.b16 %v266
    %v333 = vunpack.c.l.b16 %v267
    %v334 = vunpack.c.l.b16 %v268
    %v335 = vunpack.c.l.b16 %v269
    %v336 = vunpack.c.l.b16 %v270
    %v337 = vunpack.c.l.b16 %v271
    %v338 = vunpack.c.l.b16 %v272
    %v339 = vunpack.c.l.b16 %v273
    %v340 = vunpack.c.l.b16 %v274
    %v341 = vunpack.c.l.b16 %v275
    %v342 = vunpack.c.l.b16 %v276
    %v343 = vunpack.c.l.b16 %v277
    %v344 = vunpack.c.l.b16 %v278
    %v345 = vunpack.c.l.b16 %v279
    %v346 = vunpack.c.l.b16 %v280
    %v347 = vunpack.c.l.b16 %v281
    %v348 = vunpack.c.l.b16 %v282
    %v349 = vunpack.c.l.b16 %v283
    %v350 = vunpack.c.l.b16 %v284
    %v351 = vunpack.c.l.b16 %v285
    %v352 = vunpack.c.l.b16 %v286
    %v353 = vpack.c.b16 %v322, %v321
    %v354 = vpack.c.b16 %v324, %v323
    %v355 = vpack.c.b16 %v326, %v325
    %v356 = vpack.c.b16 %v328, %v327
    %v357 = vpack.c.b16 %v330, %v329
    %v358 = vpack.c.b16 %v332, %v331
    %v359 = vpack.c.b16 %v334, %v333
    %v360 = vpack.c.b16 %v336, %v335
    %v361 = vpack.c.b16 %v338, %v337
    %v362 = vpack.c.b16 %v340, %v339
    %v363 = vpack.c.b16 %v342, %v341
    %v364 = vpack.c.b16 %v344, %v343
    %v365 = vpack.c.b16 %v346, %v345
    %v366 = vpack.c.b16 %v348, %v347
    %v367 = vpack.c.b16 %v350, %v349
    %v368 = vpack.c.b16 %v352, %v351
    %385 = vmatpush.bf16.msra.mxu0 %v360
    %386 = vmatpush.bf16.msra.mxu0 %v359
    %387 = vmatpush.bf16.msra.mxu0 %v358
    %388 = vmatpush.bf16.msra.mxu0 %v357
    %389 = vmatpush.bf16.msra.mxu0 %v356
    %390 = vmatpush.bf16.msra.mxu0 %v355
    %391 = vmatpush.bf16.msra.mxu0 %v354
    %392 = vmatpush.bf16.msra.mxu0 %v353
    %393 = vmatmul.bf16.gmra.mxu0 %v253
    %v394 = vpop.f32.mrf.mxu0
    %v395 = vadd.f32 %v288, %v394
    %v396 = vpop.f32.mrf.mxu0
    %v397 = vadd.f32 %v288, %v396
    %398 = vdwg.mxu0
    %399 = vmatpush.bf16.msra.mxu0 %v368
    %400 = vmatpush.bf16.msra.mxu0 %v367
    %401 = vmatpush.bf16.msra.mxu0 %v366
    %402 = vmatpush.bf16.msra.mxu0 %v365
    %403 = vmatpush.bf16.msra.mxu0 %v364
    %404 = vmatpush.bf16.msra.mxu0 %v363
    %405 = vmatpush.bf16.msra.mxu0 %v362
    %406 = vmatpush.bf16.msra.mxu0 %v361
    %407 = vmatmul.bf16.gmra.mxu0 %v254
    %v408 = vpop.f32.mrf.mxu0
    %v409 = vadd.f32 %v395, %v408
    %v410 = vpop.f32.mrf.mxu0
    %v411 = vadd.f32 %v397, %v410
    %412 = vdwg.mxu0
    %v413 = vmax.f32 %v409, 0.0
    %v414 = vmax.f32 %v411, 0.0
    %v415 = vpack.c.bf16 %v414, %v413
    %v416 = vld [vmem:[#allocation8] sm:$0xf]
    %v417 = vld [vmem:[#allocation8 + $0x4] sm:$0xf]
    %v418 = vld [vmem:[#allocation8 + $0x8] sm:$0xf]
    %v419 = vld [vmem:[#allocation8 + $0xc] sm:$0xf]
    %v420 = vld [vmem:[#allocation8 + $0x10] sm:$0xf]
    %v421 = vld [vmem:[#allocation8 + $0x14] sm:$0xf]
    %v422 = vld [vmem:[#allocation8 + $0x18] sm:$0xf]
    %v423 = vld [vmem:[#allocation8 + $0x1c] sm:$0xf]
    %v424 = vld [vmem:[#allocation8 + $0x20] sm:$0xf]
    %v425 = vld [vmem:[#allocation8 + $0x24] sm:$0xf]
    %v426 = vld [vmem:[#allocation8 + $0x28] sm:$0xf]
    %v427 = vld [vmem:[#allocation8 + $0x2c] sm:$0xf]
    %v428 = vld [vmem:[#allocation8 + $0x30] sm:$0xf]
    %v429 = vld [vmem:[#allocation8 + $0x34] sm:$0xf]
    %v430 = vld [vmem:[#allocation8 + $0x38] sm:$0xf]
    %v431 = vld [vmem:[#allocation8 + $0x3c] sm:$0xf]
    %v432 = vld [vmem:[#allocation11 + $0x2] sm:$0x1]
    %v433 = vperm.slane %v432, 0
    %v450 = vunpack.c.l.b16 %v416
    %v451 = vunpack.c.l.b16 %v417
    %v452 = vunpack.c.l.b16 %v418
    %v453 = vunpack.c.l.b16 %v419
    %v454 = vunpack.c.l.b16 %v420
    %v455 = vunpack.c.l.b16 %v421
    %v456 = vunpack.c.l.b16 %v422
    %v457 = vunpack.c.l.b16 %v423
    %v458 = vunpack.c.l.b16 %v424
    %v459 = vunpack.c.l.b16 %v425
    %v460 = vunpack.c.l.b16 %v426
    %v461 = vunpack.c.l.b16 %v427
    %v462 = vunpack.c.l.b16 %v428
    %v463 = vunpack.c.l.b16 %v429
    %v464 = vunpack.c.l.b16 %v430
    %v465 = vunpack.c.l.b16 %v431
    %v466 = vpack.c.b16 %v451, %v450
    %v467 = vpack.c.b16 %v453, %v452
    %v468 = vpack.c.b16 %v455, %v454
    %v469 = vpack.c.b16 %v457, %v456
    %v470 = vpack.c.b16 %v459, %v458
    %v471 = vpack.c.b16 %v461, %v460
    %v472 = vpack.c.b16 %v463, %v462
    %v473 = vpack.c.b16 %v465, %v464
    %482 = vmatpush.bf16.msra.mxu0 %v473
    %483 = vmatpush.bf16.msra.mxu0 %v472
    %484 = vmatpush.bf16.msra.mxu0 %v471
    %485 = vmatpush.bf16.msra.mxu0 %v470
    %486 = vmatpush.bf16.msra.mxu0 %v469
    %487 = vmatpush.bf16.msra.mxu0 %v468
    %488 = vmatpush.bf16.msra.mxu0 %v467
    %489 = vmatpush.bf16.msra.mxu0 %v466
    %490 = vmatmul.bf16.gmra.mxu0 %v415
    %v491 = vpop.f32.mrf.mxu0
    %v492 = vadd.f32 %v433, %v491
    %v493 = vpop.f32.mrf.mxu0
    %v494 = vadd.f32 %v433, %v493
    %495 = vdwg.mxu0
    %v496 = vmax.f32 %v492, 0.0
    %v497 = vmax.f32 %v494, 0.0
    %v498 = vpack.c.bf16 %v497, %v496
    %v499 = vld [vmem:[#allocation10] sm:$0xf]
    %v500 = vld [vmem:[#allocation10 + $0x4] sm:$0xf]
    %v501 = vld [vmem:[#allocation10 + $0x8] sm:$0xf]
    %v502 = vld [vmem:[#allocation10 + $0xc] sm:$0xf]
    %v503 = vld [vmem:[#allocation10 + $0x10] sm:$0xf]
    %v504 = vld [vmem:[#allocation10 + $0x14] sm:$0xf]
    %v505 = vld [vmem:[#allocation10 + $0x18] sm:$0xf]
    %v506 = vld [vmem:[#allocation10 + $0x1c] sm:$0xf]
    %v507 = vld [vmem:[#allocation10 + $0x20] sm:$0xf]
    %v508 = vld [vmem:[#allocation10 + $0x24] sm:$0xf]
    %v509 = vld [vmem:[#allocation10 + $0x28] sm:$0xf]
    %v510 = vld [vmem:[#allocation10 + $0x2c] sm:$0xf]
    %v511 = vld [vmem:[#allocation10 + $0x30] sm:$0xf]
    %v512 = vld [vmem:[#allocation10 + $0x34] sm:$0xf]
    %v513 = vld [vmem:[#allocation10 + $0x38] sm:$0xf]
    %v514 = vld [vmem:[#allocation10 + $0x3c] sm:$0xf]
    %v515 = vld [vmem:[#allocation11 + $0x3] sm:$0x1]
    %v516 = vperm.slane %v515, 0
    %v533 = vunpack.c.l.b16 %v499
    %v534 = vunpack.c.l.b16 %v500
    %v535 = vunpack.c.l.b16 %v501
    %v536 = vunpack.c.l.b16 %v502
    %v537 = vunpack.c.l.b16 %v503
    %v538 = vunpack.c.l.b16 %v504
    %v539 = vunpack.c.l.b16 %v505
    %v540 = vunpack.c.l.b16 %v506
    %v541 = vunpack.c.l.b16 %v507
    %v542 = vunpack.c.l.b16 %v508
    %v543 = vunpack.c.l.b16 %v509
    %v544 = vunpack.c.l.b16 %v510
    %v545 = vunpack.c.l.b16 %v511
    %v546 = vunpack.c.l.b16 %v512
    %v547 = vunpack.c.l.b16 %v513
    %v548 = vunpack.c.l.b16 %v514
    %v549 = vpack.c.b16 %v534, %v533
    %v550 = vpack.c.b16 %v536, %v535
    %v551 = vpack.c.b16 %v538, %v537
    %v552 = vpack.c.b16 %v540, %v539
    %v553 = vpack.c.b16 %v542, %v541
    %v554 = vpack.c.b16 %v544, %v543
    %v555 = vpack.c.b16 %v546, %v545
    %v556 = vpack.c.b16 %v548, %v547
    %565 = vmatpush.bf16.msra.mxu0 %v556
    %566 = vmatpush.bf16.msra.mxu0 %v555
    %567 = vmatpush.bf16.msra.mxu0 %v554
    %568 = vmatpush.bf16.msra.mxu0 %v553
    %569 = vmatpush.bf16.msra.mxu0 %v552
    %570 = vmatpush.bf16.msra.mxu0 %v551
    %571 = vmatpush.bf16.msra.mxu0 %v550
    %572 = vmatpush.bf16.msra.mxu0 %v549
    %573 = vmatmul.bf16.gmra.mxu0 %v498
    %v574 = vpop.f32.mrf.mxu0
    %v575 = vadd.f32 %v516, %v574
    %v576 = vpop.f32.mrf.mxu0
    %v577 = vadd.f32 %v516, %v576
    %578 = vdwg.mxu0
    %579 = vst [vmem:[#allocation13] sm:$0xff] %v575
    %580 = vst [vmem:[#allocation13 + $0x8] sm:$0xff] %v577
    // Predicated region
    $region50: #{tpu_custom_call.1} parent=1 // pred_check
      _
    $region51: #{tpu_custom_call.1} parent=1 // pred_check_branch
      %582 = sbr.rel (0) target = $region53
    $region52: #{tpu_custom_call.1} parent=1 // pred_region
      %584 = vsyncadd [#allocation4], 0
      %s585 = sshll.u32 [#allocation13], 4
      %s586 = int_to_ptr.vmem [resolvable:$true] %s585
      %s587 = sshll.u32 %s6, 4
      %s588 = int_to_ptr.hbm [resolvable:$true] %s587
      %593 = dma.vmem_to_hbm [thread:$0]  %s586, 256, %s588, [#allocation4], 128, 128, 8
    $region53: #{tpu_custom_call.1} parent=1 // pred_fallthru
      _
    // Predicated region
    $region54: #{tpu_custom_call.1} parent=1 // pred_check
      _
    $region55: #{tpu_custom_call.1} parent=1 // pred_check_branch
      %595 = sbr.rel (0) target = $region57
    $region56: #{tpu_custom_call.1} parent=1 // pred_region
      %597 = dma.done [#allocation4], 256
    $region57: #{tpu_custom_call.1} parent=1 // pred_fallthru
      _
    %598 = vsyncpa [#allocation3], 1
    %599 = vsyncpa [#allocation6], 1
    %600 = vsyncpa [#allocation9], 1
    %601 = vsyncpa [#allocation12], 1
    %602 = vsyncpa [#allocation4], 1

</llo_original>
